<compile_context>
chip_gen: v5e
topology: v5e:2x2
jax: 0.10.0
libtpu: 0.0.40
codegen_flags: <defaults>
</compile_context>

<pallas_src>
import functools
import math

import jax
import jax.numpy as jnp
from jax.experimental import pallas as pl
from jax.experimental.pallas import tpu as pltpu


_SMALL_N = 512            # N <= this -> single fully-fused kernel


# ---------------------------------------------------------------------------
# helpers
# ---------------------------------------------------------------------------

def _round_up(x, m):
    return (x + m - 1) // m * m


def _grow_tile(base, cap, total):
    """Largest multiple-of-`base` power-of-two step <= cap that divides total."""
    t = base
    while t * 2 <= cap and total % (t * 2) == 0:
        t *= 2
    return t


def _compiler_params(semantics, working_set_bytes):
    # 2x headroom over the estimated working set, clamped to [16, 40] MiB:
    # raises the 16 MiB default where needed, stays under v7x's 64 MiB VMEM.
    limit = int(max(16 * 2**20, min(40 * 2**20, 2 * working_set_bytes)))
    return pltpu.CompilerParams(dimension_semantics=semantics,
                                vmem_limit_bytes=limit)


# ---------------------------------------------------------------------------
# fused single-kernel path (small N)
# ---------------------------------------------------------------------------

def _fused_small_kernel(x_ref, w_qkv_ref, b_qkv_ref, wl_ref, bl_ref,
                        gamma_ref, beta_ref, out_ref, *,
                        c_pad, q_scale, compute_dtype):
    x = x_ref[...]                                               # (n, c_pad) f32
    qkv = jnp.dot(x.astype(compute_dtype), w_qkv_ref[...],
                  preferred_element_type=jnp.float32) + b_qkv_ref[...]
    q = (qkv[:, :c_pad] * q_scale).astype(compute_dtype)
    k = qkv[:, c_pad:2 * c_pad].astype(compute_dtype)
    v = qkv[:, 2 * c_pad:]

    s = jax.lax.dot_general(q, k, (((1,), (1,)), ((), ())),
                            preferred_element_type=jnp.float32)  # (n, n)
    m = jnp.max(s, axis=-1, keepdims=True)
    p = jnp.exp(s - m)
    l = jnp.sum(p, axis=-1, keepdims=True)
    o = jnp.dot(p.astype(compute_dtype), v.astype(compute_dtype),
                preferred_element_type=jnp.float32) / l          # softmax(E) @ v
    x_r = o - v
    h = jnp.dot(x_r.astype(compute_dtype), wl_ref[...],
                preferred_element_type=jnp.float32) + bl_ref[...]

    # BatchNorm1d (training-mode batch stats, eps=1e-5) + ReLU + residual
    mu = jnp.mean(h, axis=0, keepdims=True)
    diff = h - mu
    var = jnp.mean(diff * diff, axis=0, keepdims=True)
    inv_std = jax.lax.rsqrt(var + 1e-5)
    y = jnp.maximum(diff * inv_std * gamma_ref[...] + beta_ref[...], 0.0)
    out_ref[...] = (y + x).astype(out_ref.dtype)


def _forward_small(x_pad, w_qkv_t, b_qkv, wl_t, bl, gamma, beta, *,
                   c_pad, q_scale, compute_dtype, out_dtype):
    n = x_pad.shape[0]
    itemsize = jnp.dtype(compute_dtype).itemsize
    ws = 8 * n * c_pad * 4 + 4 * c_pad * c_pad * itemsize + 3 * n * n * 4
    cost = pl.CostEstimate(
        flops=int(2 * n * c_pad * 3 * c_pad + 4 * n * n * c_pad
                  + 2 * n * c_pad * c_pad),
        transcendentals=int(n * n),
        bytes_accessed=int(2 * n * c_pad * 4 + 4 * c_pad * c_pad * itemsize))
    return pl.pallas_call(
        functools.partial(_fused_small_kernel, c_pad=c_pad, q_scale=q_scale,
                          compute_dtype=compute_dtype),
        grid=(1,),
        in_specs=[
            pl.BlockSpec((n, c_pad), lambda i: (0, 0)),
            pl.BlockSpec((c_pad, 3 * c_pad), lambda i: (0, 0)),
            pl.BlockSpec((1, 3 * c_pad), lambda i: (0, 0)),
            pl.BlockSpec((c_pad, c_pad), lambda i: (0, 0)),
            pl.BlockSpec((1, c_pad), lambda i: (0, 0)),
            pl.BlockSpec((1, c_pad), lambda i: (0, 0)),
            pl.BlockSpec((1, c_pad), lambda i: (0, 0)),
        ],
        out_specs=pl.BlockSpec((n, c_pad), lambda i: (0, 0)),
        out_shape=jax.ShapeDtypeStruct((n, c_pad), out_dtype),
        compiler_params=_compiler_params(("arbitrary",), ws),
        cost_estimate=cost,
    )(x_pad, w_qkv_t, b_qkv, wl_t, bl, gamma, beta)


# ---------------------------------------------------------------------------
# tiled three-pass path (large N)
# ---------------------------------------------------------------------------

def _qkv_proj_kernel(x_ref, w_ref, b_ref, q_ref, kt_ref, v_ref, *,
                     c_pad, q_scale, compute_dtype):
    """Pass A: fused Q/K/V projection; K is emitted pre-transposed (C, rows)."""
    x = x_ref[...].astype(compute_dtype)
    qkv = jnp.dot(x, w_ref[...], preferred_element_type=jnp.float32) + b_ref[...]
    q_ref[...] = (qkv[:, :c_pad] * q_scale).astype(q_ref.dtype)   # fold 1/sqrt(C)
    kt_ref[...] = qkv[:, c_pad:2 * c_pad].T.astype(kt_ref.dtype)  # one transpose / row tile
    v_ref[...] = qkv[:, 2 * c_pad:].astype(v_ref.dtype)


def _flash_attn_lbr_kernel(q_ref, kt_ref, v_ref, vq_ref, wl_ref, bl_ref,
                           h_ref, stats_ref, m_sc, l_sc, acc_sc, *,
                           n, tq, tk, c_pad, compute_dtype, mask_keys):
    """Pass B: flash attention + (attn@v - v) + LBR linear + BN partial sums."""
    # program_id / num_programs must stay at kernel top level (not in pl.when).
    qi = pl.program_id(0)
    ki = pl.program_id(1)
    nk = pl.num_programs(1)

    @pl.when(ki == 0)
    def _():
        m_sc[...] = jnp.full(m_sc.shape, -jnp.inf, m_sc.dtype)
        l_sc[...] = jnp.zeros(l_sc.shape, l_sc.dtype)
        acc_sc[...] = jnp.zeros(acc_sc.shape, acc_sc.dtype)

    # energy tile: lane-dense q @ K^T (K pre-transposed in pass A)
    s = jnp.dot(q_ref[...], kt_ref[...], preferred_element_type=jnp.float32)
    if mask_keys:  # static: only emitted when n is not a multiple of tk
        col = ki * tk + jax.lax.broadcasted_iota(jnp.int32, (tq, tk), 1)
        s = jnp.where(col < n, s, -1e30)

    m_prev = m_sc[...]
    m_new = jnp.maximum(m_prev, jnp.max(s, axis=-1, keepdims=True))
    p = jnp.exp(s - m_new)                      # masked cols underflow to 0
    alpha = jnp.exp(m_prev - m_new)
    l_sc[...] = alpha * l_sc[...] + jnp.sum(p, axis=-1, keepdims=True)
    acc_sc[...] = alpha * acc_sc[...] + jnp.dot(
        p.astype(compute_dtype), v_ref[...], preferred_element_type=jnp.float32)
    m_sc[...] = m_new

    @pl.when(ki == nk - 1)
    def _():
        o = acc_sc[...] / l_sc[...]                         # softmax(E) @ v
        x_r = o - vq_ref[...].astype(jnp.float32)           # - x_v (query rows)
        h = jnp.dot(x_r.astype(compute_dtype), wl_ref[...],
                    preferred_element_type=jnp.float32) + bl_ref[...]
        h_ref[...] = h.astype(h_ref.dtype)
        # BatchNorm partial stats (sum, sum of squares) over *valid* rows only.
        row = qi * tq + jax.lax.broadcasted_iota(jnp.int32, (tq, c_pad), 0)
        hm = jnp.where(row < n, h, 0.0)
        sum_h = jnp.sum(hm, axis=0, keepdims=True)           # (1, c_pad)
        sum_hh = jnp.sum(hm * hm, axis=0, keepdims=True)     # (1, c_pad)
        r8 = jax.lax.broadcasted_iota(jnp.int32, (8, c_pad), 0)
        stats = jnp.where(r8 == 0, sum_h, jnp.where(r8 == 1, sum_hh, 0.0))
        stats_ref[...] = stats.reshape(1, 8, c_pad)


def _bn_relu_residual_kernel(h_ref, x_ref, scale_ref, shift_ref, out_ref):
    """Pass C: BN apply (precomputed scale/shift) + ReLU + residual add."""
    h = h_ref[...].astype(jnp.float32)
    y = jnp.maximum(h * scale_ref[...] + shift_ref[...], 0.0)
    out_ref[...] = (y + x_ref[...]).astype(out_ref.dtype)


def _forward_tiled(x_pad, w_qkv_t, b_qkv, wl_t, bl, gamma, beta, *,
                   n, c_pad, q_scale, compute_dtype, out_dtype):
    n_pad = x_pad.shape[0]
    itemsize = jnp.dtype(compute_dtype).itemsize

    tq = 512                                   # query tile; n > 512 => g_q >= 2
    tk = _grow_tile(tq, 2048, n_pad)           # key tile (multiple of 128, | n_pad)
    tr = _grow_tile(tq, 2048, n_pad)           # row tile for passes A / C
    g_q, g_k, g_r = n_pad // tq, n_pad // tk, n_pad // tr

    # ---- Pass A: fused QKV projection (K emitted pre-transposed) -----------
    ws_a = (2 * (tr * c_pad * 4 + 3 * c_pad * c_pad * itemsize + 3 * c_pad * 4)
            + 6 * tr * c_pad * itemsize + 4 * tr * 3 * c_pad)
    cost_a = pl.CostEstimate(
        flops=int(2 * n_pad * c_pad * 3 * c_pad), transcendentals=0,
        bytes_accessed=int(n_pad * c_pad * 4 + 3 * c_pad * c_pad * itemsize
                           + 3 * n_pad * c_pad * itemsize))
    q, kt, v = pl.pallas_call(
        functools.partial(_qkv_proj_kernel, c_pad=c_pad, q_scale=q_scale,
                          compute_dtype=compute_dtype),
        grid=(g_r,),
        in_specs=[
            pl.BlockSpec((tr, c_pad), lambda i: (i, 0)),
            pl.BlockSpec((c_pad, 3 * c_pad), lambda i: (0, 0)),
            pl.BlockSpec((1, 3 * c_pad), lambda i: (0, 0)),
        ],
        out_specs=(pl.BlockSpec((tr, c_pad), lambda i: (i, 0)),
                   pl.BlockSpec((c_pad, tr), lambda i: (0, i)),
                   pl.BlockSpec((tr, c_pad), lambda i: (i, 0))),
        out_shape=(jax.ShapeDtypeStruct((n_pad, c_pad), compute_dtype),
                   jax.ShapeDtypeStruct((c_pad, n_pad), compute_dtype),
                   jax.ShapeDtypeStruct((n_pad, c_pad), compute_dtype)),
        compiler_params=_compiler_params(("parallel",), ws_a),
        cost_estimate=cost_a,
    )(x_pad, w_qkv_t, b_qkv)

    # ---- Pass B: flash attention + LBR linear + BN partial stats ------------
    mask_keys = (n % tk) != 0
    ws_b = (2 * (2 * tq * c_pad + 2 * tk * c_pad + c_pad * c_pad + c_pad) * itemsize
            + 2 * (tq * c_pad * itemsize + 8 * c_pad * 4)
            + (2 * tq + tq * c_pad) * 4 + 3 * tq * tk * 4)
    cost_b = pl.CostEstimate(
        flops=int(4 * n_pad * n_pad * c_pad + 2 * n_pad * c_pad * c_pad),
        transcendentals=int(n_pad * n_pad),
        bytes_accessed=int((2 + 2 * g_q) * n_pad * c_pad * itemsize
                           + g_q * (c_pad * c_pad + c_pad) * itemsize
                           + n_pad * c_pad * itemsize + g_q * 8 * c_pad * 4))
    h, stats = pl.pallas_call(
        functools.partial(_flash_attn_lbr_kernel, n=n, tq=tq, tk=tk,
                          c_pad=c_pad, compute_dtype=compute_dtype,
                          mask_keys=mask_keys),
        grid=(g_q, g_k),
        in_specs=[
            pl.BlockSpec((tq, c_pad), lambda qi, ki: (qi, 0)),    # q
            pl.BlockSpec((c_pad, tk), lambda qi, ki: (0, ki)),    # K^T
            pl.BlockSpec((tk, c_pad), lambda qi, ki: (ki, 0)),    # v (key rows)
            pl.BlockSpec((tq, c_pad), lambda qi, ki: (qi, 0)),    # v (query rows)
            pl.BlockSpec((c_pad, c_pad), lambda qi, ki: (0, 0)),  # Wl^T
            pl.BlockSpec((1, c_pad), lambda qi, ki: (0, 0)),      # bl
        ],
        out_specs=(pl.BlockSpec((tq, c_pad), lambda qi, ki: (qi, 0)),
                   pl.BlockSpec((1, 8, c_pad), lambda qi, ki: (qi, 0, 0))),
        out_shape=(jax.ShapeDtypeStruct((n_pad, c_pad), compute_dtype),
                   jax.ShapeDtypeStruct((g_q, 8, c_pad), jnp.float32)),
        scratch_shapes=[pltpu.VMEM((tq, 1), jnp.float32),
                        pltpu.VMEM((tq, 1), jnp.float32),
                        pltpu.VMEM((tq, c_pad), jnp.float32)],
        compiler_params=_compiler_params(("parallel", "arbitrary"), ws_b),
        cost_estimate=cost_b,
    )(q, kt, v, v, wl_t, bl)

    # ---- global BatchNorm stats (tiny reduction over per-tile partials) -----
    totals = jnp.sum(stats, axis=0)                        # (8, c_pad)
    mu = totals[0] / n                                     # biased batch stats
    var = jnp.maximum(totals[1] / n - mu * mu, 0.0)
    inv_std = jax.lax.rsqrt(var + 1e-5)
    bn_scale = (gamma[0] * inv_std).reshape(1, c_pad)
    bn_shift = (beta[0] - mu * gamma[0] * inv_std).reshape(1, c_pad)

    # ---- Pass C: BN apply + ReLU + residual add ------------------------------
    ws_c = 2 * (tr * c_pad * itemsize + 2 * tr * c_pad * 4 + 2 * c_pad * 4)
    cost_c = pl.CostEstimate(
        flops=int(4 * n_pad * c_pad), transcendentals=0,
        bytes_accessed=int(n_pad * c_pad * (2 * 4 + itemsize) + 2 * c_pad * 4))
    out_pad = pl.pallas_call(
        _bn_relu_residual_kernel,
        grid=(g_r,),
        in_specs=[
            pl.BlockSpec((tr, c_pad), lambda i: (i, 0)),
            pl.BlockSpec((tr, c_pad), lambda i: (i, 0)),
            pl.BlockSpec((1, c_pad), lambda i: (0, 0)),
            pl.BlockSpec((1, c_pad), lambda i: (0, 0)),
        ],
        out_specs=pl.BlockSpec((tr, c_pad), lambda i: (i, 0)),
        out_shape=jax.ShapeDtypeStruct((n_pad, c_pad), out_dtype),
        compiler_params=_compiler_params(("parallel",), ws_c),
        cost_estimate=cost_c,
    )(h, x_pad, bn_scale, bn_shift)
    return out_pad


# ---------------------------------------------------------------------------
# top-level wrapper
# ---------------------------------------------------------------------------

@functools.partial(jax.jit, static_argnames=("use_bf16",))
def resunet_position_attention(x_feat, params, use_bf16=True):
    """x_feat: (N, C) sparse-tensor features.  Returns (N, C) features."""
    n, c = x_feat.shape
    c_pad = _round_up(c, 128)
    compute_dtype = jnp.bfloat16 if use_bf16 else jnp.float32
    q_scale = 1.0 / math.sqrt(float(c))

    # Fused, pre-transposed, channel-padded weights (shared by both paths).
    w_qkv_t = jnp.zeros((c_pad, 3 * c_pad), jnp.float32)
    b_qkv = jnp.zeros((1, 3 * c_pad), jnp.float32)
    for j, (wn, bn) in enumerate((("wq", "bq"), ("wk", "bk"), ("wv", "bv"))):
        w_qkv_t = w_qkv_t.at[:c, j * c_pad:j * c_pad + c].set(params[wn].T)
        b_qkv = b_qkv.at[0, j * c_pad:j * c_pad + c].set(params[bn].reshape(-1))
    w_qkv_t = w_qkv_t.astype(compute_dtype)
    wl_t = jnp.zeros((c_pad, c_pad), jnp.float32).at[:c, :c].set(
        params["wl"].T).astype(compute_dtype)
    bl = jnp.zeros((1, c_pad), jnp.float32).at[0, :c].set(params["bl"].reshape(-1))
    gamma = jnp.zeros((1, c_pad), jnp.float32).at[0, :c].set(
        params["gamma"].reshape(-1))
    beta = jnp.zeros((1, c_pad), jnp.float32).at[0, :c].set(
        params["beta"].reshape(-1))

    if n <= _SMALL_N:
        # Everything fits in VMEM: one fused kernel, no row padding, no q/k/v
        # HBM round trip (launch/DMA overhead dominates at this size).
        x_pad = jnp.zeros((n, c_pad), jnp.float32).at[:, :c].set(
            x_feat.astype(jnp.float32))
        out_pad = _forward_small(x_pad, w_qkv_t, b_qkv, wl_t, bl, gamma, beta,
                                 c_pad=c_pad, q_scale=q_scale,
                                 compute_dtype=compute_dtype,
                                 out_dtype=x_feat.dtype)
        return out_pad[:, :c]

    # Tiled three-pass path; rows padded only to the 512-row query tile.
    n_pad = _round_up(n, 512)
    x_pad = jnp.zeros((n_pad, c_pad), jnp.float32).at[:n, :c].set(
        x_feat.astype(jnp.float32))
    out_pad = _forward_tiled(x_pad, w_qkv_t, b_qkv, wl_t, bl, gamma, beta,
                             n=n, c_pad=c_pad, q_scale=q_scale,
                             compute_dtype=compute_dtype,
                             out_dtype=x_feat.dtype)
    return out_pad[:n, :c]


# ---------------------------------------------------------------------------
# params + pure-JAX reference (matches the PyTorch module semantics)
# ---------------------------------------------------------------------------

def init_params(key, channels):
    ks = jax.random.split(key, 8)
    scale = 1.0 / jnp.sqrt(jnp.float32(channels))

    def lin_w(k):
        return jax.random.uniform(k, (channels, channels), jnp.float32,
                                  minval=-1.0, maxval=1.0) * scale

    def lin_b(k):
        return jax.random.uniform(k, (1, channels), jnp.float32,
                                  minval=-1.0, maxval=1.0) * scale

    return {
        "wq": lin_w(ks[0]), "bq": lin_b(ks[1]),
        "wk": lin_w(ks[2]), "bk": lin_b(ks[3]),
        "wv": lin_w(ks[4]), "bv": lin_b(ks[5]),
        "wl": lin_w(ks[6]), "bl": lin_b(ks[7]),
        "gamma": jnp.ones((1, channels), jnp.float32),   # BatchNorm1d weight
        "beta": jnp.zeros((1, channels), jnp.float32),   # BatchNorm1d bias
    }


def reference_forward(x, p):
    x_q = x @ p["wq"].T + p["bq"]
    x_k = x @ p["wk"].T + p["bk"]
    x_v = x @ p["wv"].T + p["bv"]
    energy = (x_q @ x_k.T) / jnp.sqrt(jnp.float32(x.shape[-1]))
    attn = jax.nn.softmax(energy, axis=-1)
    x_r = attn @ x_v - x_v
    h = x_r @ p["wl"].T + p["bl"]
    mu = jnp.mean(h, axis=0, keepdims=True)
    var = jnp.mean(jnp.square(h - mu), axis=0, keepdims=True)
    h = (h - mu) / jnp.sqrt(var + 1e-5) * p["gamma"] + p["beta"]
    h = jnp.maximum(h, 0.0)
    return h + x


if __name__ == "__main__":
    key = jax.random.PRNGKey(0)
    kx1, kp1, kx2, kp2 = jax.random.split(key, 4)

    # 1) small shape -> fully fused single-kernel path
    N1, C1 = 64, 32
    x1 = jax.random.normal(kx1, (N1, C1), jnp.float32)
    p1 = init_params(kp1, C1)
    ref1 = reference_forward(x1, p1)

    out1 = jax.block_until_ready(
        resunet_position_attention(x1, p1, use_bf16=False))
    assert out1.shape == (N1, C1)
    assert jnp.allclose(out1, ref1, rtol=2e-3, atol=2e-3), "small f32 mismatch"
    out1b = jax.block_until_ready(
        resunet_position_attention(x1, p1, use_bf16=True))
    assert jnp.allclose(out1b, ref1, rtol=1e-1, atol=1e-1), "small bf16 mismatch"

    # 2) larger shape -> tiled flash-attention path (multi key tile + masking)
    N2, C2 = 1100, 32
    x2 = jax.random.normal(kx2, (N2, C2), jnp.float32)
    p2 = init_params(kp2, C2)
    ref2 = reference_forward(x2, p2)

    out2 = jax.block_until_ready(
        resunet_position_attention(x2, p2, use_bf16=False))
    assert out2.shape == (N2, C2)
    assert jnp.allclose(out2, ref2, rtol=2e-3, atol=2e-3), "tiled f32 mismatch"
    out2b = jax.block_until_ready(
        resunet_position_attention(x2, p2, use_bf16=True))
    assert jnp.allclose(out2b, ref2, rtol=1e-1, atol=1e-1), "tiled bf16 mismatch"

    print("KERNEL_OK")
</pallas_src>

<mosaic_0001>
module attributes {stable_mosaic.version = 11 : i64} {
  func.func @_fused_small_kernel(%arg0: i32, %arg1: memref<64x128xf32, #tpu.memory_space<vmem>>, %arg2: memref<128x384xf32, #tpu.memory_space<vmem>>, %arg3: memref<1x384xf32, #tpu.memory_space<vmem>>, %arg4: memref<128x128xf32, #tpu.memory_space<vmem>>, %arg5: memref<1x128xf32, #tpu.memory_space<vmem>>, %arg6: memref<1x128xf32, #tpu.memory_space<vmem>>, %arg7: memref<1x128xf32, #tpu.memory_space<vmem>>, %arg8: memref<64x128xf32, #tpu.memory_space<vmem>>) attributes {dimension_semantics = [#tpu.dimension_semantics<arbitrary>], iteration_bounds = array<i64: 1>, scalar_prefetch = 0 : i64, scratch_operands = 0 : i64, tpu.core_type = #tpu.core_type<tc>, window_params = [{pipeline_mode = #tpu.pipeline_mode<synchronous>, transform_indices = @transform_0, window_bounds = array<i64: 64, 128>}, {pipeline_mode = #tpu.pipeline_mode<synchronous>, transform_indices = @transform_1, window_bounds = array<i64: 128, 384>}, {pipeline_mode = #tpu.pipeline_mode<synchronous>, transform_indices = @transform_2, window_bounds = array<i64: 1, 384>}, {pipeline_mode = #tpu.pipeline_mode<synchronous>, transform_indices = @transform_3, window_bounds = array<i64: 128, 128>}, {pipeline_mode = #tpu.pipeline_mode<synchronous>, transform_indices = @transform_4, window_bounds = array<i64: 1, 128>}, {pipeline_mode = #tpu.pipeline_mode<synchronous>, transform_indices = @transform_5, window_bounds = array<i64: 1, 128>}, {pipeline_mode = #tpu.pipeline_mode<synchronous>, transform_indices = @transform_6, window_bounds = array<i64: 1, 128>}, {pipeline_mode = #tpu.pipeline_mode<synchronous>, transform_indices = @transform_7, window_bounds = array<i64: 64, 128>}]} {
    %c0 = arith.constant 0 : index
    %c0_0 = arith.constant 0 : index
    %0 = vector.load %arg1[%c0, %c0_0] : memref<64x128xf32, #tpu.memory_space<vmem>>, vector<64x128xf32>
    %c0_1 = arith.constant 0 : index
    %c0_2 = arith.constant 0 : index
    %1 = vector.load %arg2[%c0_1, %c0_2] : memref<128x384xf32, #tpu.memory_space<vmem>>, vector<128x384xf32>
    %cst = arith.constant dense<0.000000e+00> : vector<64x384xf32>
    %2 = tpu.matmul %0, %1, %cst {dimension_numbers = #tpu.dot_dimension_numbers<[1], [0], [0], [1], [0, 0, 1, 1], [], []>} : vector<64x128xf32>, vector<128x384xf32>, vector<64x384xf32> -> vector<64x384xf32>
    %c0_3 = arith.constant 0 : index
    %c0_4 = arith.constant 0 : index
    %3 = vector.load %arg3[%c0_3, %c0_4] : memref<1x384xf32, #tpu.memory_space<vmem>>, vector<1x384xf32>
    %4 = vector.broadcast %3 : vector<1x384xf32> to vector<64x384xf32>
    %5 = arith.addf %2, %4 : vector<64x384xf32>
    %6 = vector.extract_strided_slice %5 {offsets = [0, 0], sizes = [64, 128], strides = [1, 1]} : vector<64x384xf32> to vector<64x128xf32>
    %cst_5 = arith.constant 0.176776692 : f32
    %7 = vector.broadcast %cst_5 : f32 to vector<64x128xf32>
    %8 = arith.mulf %6, %7 : vector<64x128xf32>
    %9 = vector.extract_strided_slice %5 {offsets = [0, 128], sizes = [64, 128], strides = [1, 1]} : vector<64x384xf32> to vector<64x128xf32>
    %10 = vector.extract_strided_slice %5 {offsets = [0, 256], sizes = [64, 128], strides = [1, 1]} : vector<64x384xf32> to vector<64x128xf32>
    %cst_6 = arith.constant dense<0.000000e+00> : vector<64x64xf32>
    %11 = tpu.matmul %8, %9, %cst_6 {dimension_numbers = #tpu.dot_dimension_numbers<[1], [1], [0], [0], [0, 0, 1, 0], [], []>} : vector<64x128xf32>, vector<64x128xf32>, vector<64x64xf32> -> vector<64x64xf32>
    %cst_7 = arith.constant dense<0xFF800000> : vector<64xf32>
    %12 = vector.multi_reduction <maximumf>, %11, %cst_7 [1] : vector<64x64xf32> to vector<64xf32>
    %13 = vector.shape_cast %12 : vector<64xf32> to vector<64x1xf32>
    %14 = vector.broadcast %13 : vector<64x1xf32> to vector<64x64xf32>
    %15 = arith.subf %11, %14 : vector<64x64xf32>
    %16 = math.exp %15 : vector<64x64xf32>
    %cst_8 = arith.constant dense<0.000000e+00> : vector<64xf32>
    %17 = vector.multi_reduction <add>, %16, %cst_8 [1] : vector<64x64xf32> to vector<64xf32>
    %18 = vector.shape_cast %17 : vector<64xf32> to vector<64x1xf32>
    %cst_9 = arith.constant dense<0.000000e+00> : vector<64x128xf32>
    %19 = tpu.matmul %16, %10, %cst_9 {dimension_numbers = #tpu.dot_dimension_numbers<[1], [0], [0], [1], [0, 0, 1, 1], [], []>} : vector<64x64xf32>, vector<64x128xf32>, vector<64x128xf32> -> vector<64x128xf32>
    %20 = vector.broadcast %18 : vector<64x1xf32> to vector<64x128xf32>
    %21 = arith.divf %19, %20 : vector<64x128xf32>
    %22 = arith.subf %21, %10 : vector<64x128xf32>
    %c0_10 = arith.constant 0 : index
    %c0_11 = arith.constant 0 : index
    %23 = vector.load %arg4[%c0_10, %c0_11] : memref<128x128xf32, #tpu.memory_space<vmem>>, vector<128x128xf32>
    %cst_12 = arith.constant dense<0.000000e+00> : vector<64x128xf32>
    %24 = tpu.matmul %22, %23, %cst_12 {dimension_numbers = #tpu.dot_dimension_numbers<[1], [0], [0], [1], [0, 0, 1, 1], [], []>} : vector<64x128xf32>, vector<128x128xf32>, vector<64x128xf32> -> vector<64x128xf32>
    %c0_13 = arith.constant 0 : index
    %c0_14 = arith.constant 0 : index
    %25 = vector.load %arg5[%c0_13, %c0_14] : memref<1x128xf32, #tpu.memory_space<vmem>>, vector<1x128xf32>
    %26 = vector.broadcast %25 : vector<1x128xf32> to vector<64x128xf32>
    %27 = arith.addf %24, %26 : vector<64x128xf32>
    %cst_15 = arith.constant dense<0.000000e+00> : vector<128xf32>
    %28 = vector.multi_reduction <add>, %27, %cst_15 [0] : vector<64x128xf32> to vector<128xf32>
    %29 = vector.shape_cast %28 : vector<128xf32> to vector<1x128xf32>
    %cst_16 = arith.constant 6.400000e+01 : f32
    %30 = vector.broadcast %cst_16 : f32 to vector<1x128xf32>
    %31 = arith.divf %29, %30 : vector<1x128xf32>
    %32 = vector.broadcast %31 : vector<1x128xf32> to vector<64x128xf32>
    %33 = arith.subf %27, %32 : vector<64x128xf32>
    %34 = arith.mulf %33, %33 : vector<64x128xf32>
    %cst_17 = arith.constant dense<0.000000e+00> : vector<128xf32>
    %35 = vector.multi_reduction <add>, %34, %cst_17 [0] : vector<64x128xf32> to vector<128xf32>
    %36 = vector.shape_cast %35 : vector<128xf32> to vector<1x128xf32>
    %cst_18 = arith.constant 6.400000e+01 : f32
    %37 = vector.broadcast %cst_18 : f32 to vector<1x128xf32>
    %38 = arith.divf %36, %37 : vector<1x128xf32>
    %cst_19 = arith.constant 9.99999974E-6 : f32
    %39 = vector.broadcast %cst_19 : f32 to vector<1x128xf32>
    %40 = arith.addf %38, %39 : vector<1x128xf32>
    %41 = math.rsqrt %40 : vector<1x128xf32>
    %42 = vector.broadcast %41 : vector<1x128xf32> to vector<64x128xf32>
    %43 = arith.mulf %33, %42 : vector<64x128xf32>
    %c0_20 = arith.constant 0 : index
    %c0_21 = arith.constant 0 : index
    %44 = vector.load %arg6[%c0_20, %c0_21] : memref<1x128xf32, #tpu.memory_space<vmem>>, vector<1x128xf32>
    %45 = vector.broadcast %44 : vector<1x128xf32> to vector<64x128xf32>
    %46 = arith.mulf %43, %45 : vector<64x128xf32>
    %c0_22 = arith.constant 0 : index
    %c0_23 = arith.constant 0 : index
    %47 = vector.load %arg7[%c0_22, %c0_23] : memref<1x128xf32, #tpu.memory_space<vmem>>, vector<1x128xf32>
    %48 = vector.broadcast %47 : vector<1x128xf32> to vector<64x128xf32>
    %49 = arith.addf %46, %48 : vector<64x128xf32>
    %cst_24 = arith.constant 0.000000e+00 : f32
    %50 = vector.broadcast %cst_24 : f32 to vector<64x128xf32>
    %51 = arith.maximumf %49, %50 : vector<64x128xf32>
    %52 = arith.addf %51, %0 : vector<64x128xf32>
    %c0_25 = arith.constant 0 : index
    %c0_26 = arith.constant 0 : index
    %53 = vector.load %arg8[%c0_25, %c0_26] : memref<64x128xf32, #tpu.memory_space<vmem>>, vector<64x128xf32>
    tpu.vector_store %arg8[%c0_25, %c0_26], %52 {strides = array<i32>} : memref<64x128xf32, #tpu.memory_space<vmem>>, vector<64x128xf32>,
    return
  }
  func.func @transform_0(%arg0: i32) -> (i32, i32) {
    %c0_i32 = arith.constant 0 : i32
    %c0_i32_0 = arith.constant 0 : i32
    %c0_i32_1 = arith.constant 0 : i32
    return %c0_i32, %c0_i32_0 : i32, i32
  }
  func.func @transform_1(%arg0: i32) -> (i32, i32) {
    %c0_i32 = arith.constant 0 : i32
    %c0_i32_0 = arith.constant 0 : i32
    %c0_i32_1 = arith.constant 0 : i32
    return %c0_i32, %c0_i32_0 : i32, i32
  }
  func.func @transform_2(%arg0: i32) -> (i32, i32) {
    %c0_i32 = arith.constant 0 : i32
    %c0_i32_0 = arith.constant 0 : i32
    %c0_i32_1 = arith.constant 0 : i32
    return %c0_i32, %c0_i32_0 : i32, i32
  }
  func.func @transform_3(%arg0: i32) -> (i32, i32) {
    %c0_i32 = arith.constant 0 : i32
    %c0_i32_0 = arith.constant 0 : i32
    %c0_i32_1 = arith.constant 0 : i32
    return %c0_i32, %c0_i32_0 : i32, i32
  }
  func.func @transform_4(%arg0: i32) -> (i32, i32) {
    %c0_i32 = arith.constant 0 : i32
    %c0_i32_0 = arith.constant 0 : i32
    %c0_i32_1 = arith.constant 0 : i32
    return %c0_i32, %c0_i32_0 : i32, i32
  }
  func.func @transform_5(%arg0: i32) -> (i32, i32) {
    %c0_i32 = arith.constant 0 : i32
    %c0_i32_0 = arith.constant 0 : i32
    %c0_i32_1 = arith.constant 0 : i32
    return %c0_i32, %c0_i32_0 : i32, i32
  }
  func.func @transform_6(%arg0: i32) -> (i32, i32) {
    %c0_i32 = arith.constant 0 : i32
    %c0_i32_0 = arith.constant 0 : i32
    %c0_i32_1 = arith.constant 0 : i32
    return %c0_i32, %c0_i32_0 : i32, i32
  }
  func.func @transform_7(%arg0: i32) -> (i32, i32) {
    %c0_i32 = arith.constant 0 : i32
    %c0_i32_0 = arith.constant 0 : i32
    %c0_i32_1 = arith.constant 0 : i32
    return %c0_i32, %c0_i32_0 : i32, i32
  }
}

</mosaic_0001>

<llo_original>
// kernel: resunet_position_attention.1
$region0: #{resunet_position_attention.1}
  #allocation0 [shape = 'u32[]', space=smem, size = 0x4, offset = 0x4, fixed_abs, tag = 'smem constant byte address 0x4 - core index']
  #allocation1 [shape = 'u32[72,128]{1,0:T(1,128)}', space=vmem, size = 0x9000, scoped, tag = 'internal scratch']
  %s0 = inlined_call_operand.vmem [shape: f32[64,128], index: 0, kind: input, shape index: {}]
  %s1 = inlined_call_operand.vmem [shape: f32[128,384], index: 1, kind: input, shape index: {}]
  %s2 = inlined_call_operand.vmem [shape: f32[1,384], index: 2, kind: input, shape index: {}]
  %s3 = inlined_call_operand.vmem [shape: f32[128,128], index: 3, kind: input, shape index: {}]
  %s4 = inlined_call_operand.vmem [shape: f32[1,128], index: 4, kind: input, shape index: {}]
  %s5 = inlined_call_operand.vmem [shape: f32[1,128], index: 5, kind: input, shape index: {}]
  %s6 = inlined_call_operand.vmem [shape: f32[1,128], index: 6, kind: input, shape index: {}]
  %s7 = inlined_call_operand.vmem [shape: f32[64,128], index: 7, kind: output, shape index: {}]
  %s8 = sld [smem:[#allocation0]]
  $region38: #{resunet_position_attention.1} parent=0
    _
  %s10 = ssub.s32 1, %s8
  %s11 = scalar_select 0, %s10, %s8
  // Predicated region
  $region2: #{resunet_position_attention.1} parent=0 // pred_check
    _
  $region3: #{resunet_position_attention.1} parent=0 // pred_check_branch
    %13 = sbr.rel (0) target = $region5
  $region4: #{resunet_position_attention.1} parent=0 // pred_region
    _
  $region5: #{resunet_position_attention.1} parent=0 // pred_fallthru
    _
  // Predicated region
  $region6: #{resunet_position_attention.1} parent=0 // pred_check
    _
  $region7: #{resunet_position_attention.1} parent=0 // pred_check_branch
    %15 = sbr.rel (0) target = $region9
  $region8: #{resunet_position_attention.1} parent=0 // pred_region
    _
  $region9: #{resunet_position_attention.1} parent=0 // pred_fallthru
    _
  // Predicated region
  $region10: #{resunet_position_attention.1} parent=0 // pred_check
    _
  $region11: #{resunet_position_attention.1} parent=0 // pred_check_branch
    %17 = sbr.rel (0) target = $region13
  $region12: #{resunet_position_attention.1} parent=0 // pred_region
    _
  $region13: #{resunet_position_attention.1} parent=0 // pred_fallthru
    _
  // Predicated region
  $region14: #{resunet_position_attention.1} parent=0 // pred_check
    _
  $region15: #{resunet_position_attention.1} parent=0 // pred_check_branch
    %19 = sbr.rel (0) target = $region17
  $region16: #{resunet_position_attention.1} parent=0 // pred_region
    _
  $region17: #{resunet_position_attention.1} parent=0 // pred_fallthru
    _
  // Predicated region
  $region18: #{resunet_position_attention.1} parent=0 // pred_check
    _
  $region19: #{resunet_position_attention.1} parent=0 // pred_check_branch
    %21 = sbr.rel (0) target = $region21
  $region20: #{resunet_position_attention.1} parent=0 // pred_region
    _
  $region21: #{resunet_position_attention.1} parent=0 // pred_fallthru
    _
  // Predicated region
  $region22: #{resunet_position_attention.1} parent=0 // pred_check
    _
  $region23: #{resunet_position_attention.1} parent=0 // pred_check_branch
    %23 = sbr.rel (0) target = $region25
  $region24: #{resunet_position_attention.1} parent=0 // pred_region
    _
  $region25: #{resunet_position_attention.1} parent=0 // pred_fallthru
    _
  // Predicated region
  $region26: #{resunet_position_attention.1} parent=0 // pred_check
    _
  $region27: #{resunet_position_attention.1} parent=0 // pred_check_branch
    %25 = sbr.rel (0) target = $region29
  $region28: #{resunet_position_attention.1} parent=0 // pred_region
    _
  $region29: #{resunet_position_attention.1} parent=0 // pred_fallthru
    _
  %v26 = vld [vmem:[%s0] sm:$0xff]
  %v27 = vld [vmem:[%s0 + $0x8] sm:$0xff]
  %v28 = vld [vmem:[%s0 + $0x10] sm:$0xff]
  %v29 = vld [vmem:[%s0 + $0x18] sm:$0xff]
  %v30 = vld [vmem:[%s0 + $0x20] sm:$0xff]
  %v31 = vld [vmem:[%s0 + $0x28] sm:$0xff]
  %v32 = vld [vmem:[%s0 + $0x30] sm:$0xff]
  %v33 = vld [vmem:[%s0 + $0x38] sm:$0xff]
  %v34 = vld [vmem:[%s1] sm:$0xff]
  %v35 = vld [vmem:[%s1 + $0x8] sm:$0xff]
  %v36 = vld [vmem:[%s1 + $0x10] sm:$0xff]
  %v37 = vld [vmem:[%s1 + $0x18] sm:$0xff]
  %v38 = vld [vmem:[%s1 + $0x20] sm:$0xff]
  %v39 = vld [vmem:[%s1 + $0x28] sm:$0xff]
  %v40 = vld [vmem:[%s1 + $0x30] sm:$0xff]
  %v41 = vld [vmem:[%s1 + $0x38] sm:$0xff]
  %v42 = vld [vmem:[%s1 + $0x40] sm:$0xff]
  %v43 = vld [vmem:[%s1 + $0x48] sm:$0xff]
  %v44 = vld [vmem:[%s1 + $0x50] sm:$0xff]
  %v45 = vld [vmem:[%s1 + $0x58] sm:$0xff]
  %v46 = vld [vmem:[%s1 + $0x60] sm:$0xff]
  %v47 = vld [vmem:[%s1 + $0x68] sm:$0xff]
  %v48 = vld [vmem:[%s1 + $0x70] sm:$0xff]
  %v49 = vld [vmem:[%s1 + $0x78] sm:$0xff]
  %v50 = vld [vmem:[%s1 + $0x80] sm:$0xff]
  %v51 = vld [vmem:[%s1 + $0x88] sm:$0xff]
  %v52 = vld [vmem:[%s1 + $0x90] sm:$0xff]
  %v53 = vld [vmem:[%s1 + $0x98] sm:$0xff]
  %v54 = vld [vmem:[%s1 + $0xa0] sm:$0xff]
  %v55 = vld [vmem:[%s1 + $0xa8] sm:$0xff]
  %v56 = vld [vmem:[%s1 + $0xb0] sm:$0xff]
  %v57 = vld [vmem:[%s1 + $0xb8] sm:$0xff]
  %v58 = vld [vmem:[%s1 + $0xc0] sm:$0xff]
  %v59 = vld [vmem:[%s1 + $0xc8] sm:$0xff]
  %v60 = vld [vmem:[%s1 + $0xd0] sm:$0xff]
  %v61 = vld [vmem:[%s1 + $0xd8] sm:$0xff]
  %v62 = vld [vmem:[%s1 + $0xe0] sm:$0xff]
  %v63 = vld [vmem:[%s1 + $0xe8] sm:$0xff]
  %v64 = vld [vmem:[%s1 + $0xf0] sm:$0xff]
  %v65 = vld [vmem:[%s1 + $0xf8] sm:$0xff]
  %v66 = vld [vmem:[%s1 + $0x100] sm:$0xff]
  %v67 = vld [vmem:[%s1 + $0x108] sm:$0xff]
  %v68 = vld [vmem:[%s1 + $0x110] sm:$0xff]
  %v69 = vld [vmem:[%s1 + $0x118] sm:$0xff]
  %v70 = vld [vmem:[%s1 + $0x120] sm:$0xff]
  %v71 = vld [vmem:[%s1 + $0x128] sm:$0xff]
  %v72 = vld [vmem:[%s1 + $0x130] sm:$0xff]
  %v73 = vld [vmem:[%s1 + $0x138] sm:$0xff]
  %v74 = vld [vmem:[%s1 + $0x140] sm:$0xff]
  %v75 = vld [vmem:[%s1 + $0x148] sm:$0xff]
  %v76 = vld [vmem:[%s1 + $0x150] sm:$0xff]
  %v77 = vld [vmem:[%s1 + $0x158] sm:$0xff]
  %v78 = vld [vmem:[%s1 + $0x160] sm:$0xff]
  %v79 = vld [vmem:[%s1 + $0x168] sm:$0xff]
  %v80 = vld [vmem:[%s1 + $0x170] sm:$0xff]
  %v81 = vld [vmem:[%s1 + $0x178] sm:$0xff]
  %v82 = vld [vmem:[%s2] sm:$0x7]
  %v84 = vperm.slane %v82, 0
  %v85 = vperm.slane %v82, 1
  %v86 = vperm.slane %v82, 2
  %90 = vmatpush.msra.mxu0 %v79
  %91 = vmatpush.msra.mxu0 %v76
  %92 = vmatpush.msra.mxu0 %v73
  %93 = vmatpush.msra.mxu0 %v70
  %94 = vmatpush.msra.mxu0 %v67
  %95 = vmatpush.msra.mxu0 %v64
  %96 = vmatpush.msra.mxu0 %v61
  %97 = vmatpush.msra.mxu0 %v58
  %98 = vmatpush.msra.mxu0 %v55
  %99 = vmatpush.msra.mxu0 %v52
  %100 = vmatpush.msra.mxu0 %v49
  %101 = vmatpush.msra.mxu0 %v46
  %102 = vmatpush.msra.mxu0 %v43
  %103 = vmatpush.msra.mxu0 %v40
  %104 = vmatpush.msra.mxu0 %v37
  %105 = vmatpush.msra.mxu0 %v34
  %106 = vmatmul.f32.gmra.mxu0 %v26
  %v107 = vpop.f32.mrf.mxu0
  %v108 = vadd.f32 %v84, %v107
  %109 = vmatmul.f32.gmra.mxu0 %v27
  %v110 = vpop.f32.mrf.mxu0
  %v111 = vadd.f32 %v84, %v110
  %112 = vmatmul.f32.gmra.mxu0 %v28
  %v113 = vpop.f32.mrf.mxu0
  %v114 = vadd.f32 %v84, %v113
  %115 = vmatmul.f32.gmra.mxu0 %v29
  %v116 = vpop.f32.mrf.mxu0
  %v117 = vadd.f32 %v84, %v116
  %118 = vmatmul.f32.gmra.mxu0 %v30
  %v119 = vpop.f32.mrf.mxu0
  %v120 = vadd.f32 %v84, %v119
  %121 = vmatmul.f32.gmra.mxu0 %v31
  %v122 = vpop.f32.mrf.mxu0
  %v123 = vadd.f32 %v84, %v122
  %124 = vmatmul.f32.gmra.mxu0 %v32
  %v125 = vpop.f32.mrf.mxu0
  %v126 = vadd.f32 %v84, %v125
  %127 = vmatmul.f32.gmra.mxu0 %v33
  %v128 = vpop.f32.mrf.mxu0
  %v129 = vadd.f32 %v84, %v128
  %130 = vdwg.mxu0
  %131 = vmatpush.msra.mxu0 %v80
  %132 = vmatpush.msra.mxu0 %v77
  %133 = vmatpush.msra.mxu0 %v74
  %134 = vmatpush.msra.mxu0 %v71
  %135 = vmatpush.msra.mxu0 %v68
  %136 = vmatpush.msra.mxu0 %v65
  %137 = vmatpush.msra.mxu0 %v62
  %138 = vmatpush.msra.mxu0 %v59
  %139 = vmatpush.msra.mxu0 %v56
  %140 = vmatpush.msra.mxu0 %v53
  %141 = vmatpush.msra.mxu0 %v50
  %142 = vmatpush.msra.mxu0 %v47
  %143 = vmatpush.msra.mxu0 %v44
  %144 = vmatpush.msra.mxu0 %v41
  %145 = vmatpush.msra.mxu0 %v38
  %146 = vmatpush.msra.mxu0 %v35
  %147 = vmatmul.f32.gmra.mxu0 %v26
  %v148 = vpop.f32.mrf.mxu0
  %v149 = vadd.f32 %v85, %v148
  %150 = vmatmul.f32.gmra.mxu0 %v27
  %v151 = vpop.f32.mrf.mxu0
  %v152 = vadd.f32 %v85, %v151
  %153 = vmatmul.f32.gmra.mxu0 %v28
  %v154 = vpop.f32.mrf.mxu0
  %v155 = vadd.f32 %v85, %v154
  %156 = vmatmul.f32.gmra.mxu0 %v29
  %v157 = vpop.f32.mrf.mxu0
  %v158 = vadd.f32 %v85, %v157
  %159 = vmatmul.f32.gmra.mxu0 %v30
  %v160 = vpop.f32.mrf.mxu0
  %v161 = vadd.f32 %v85, %v160
  %162 = vmatmul.f32.gmra.mxu0 %v31
  %v163 = vpop.f32.mrf.mxu0
  %v164 = vadd.f32 %v85, %v163
  %165 = vmatmul.f32.gmra.mxu0 %v32
  %v166 = vpop.f32.mrf.mxu0
  %v167 = vadd.f32 %v85, %v166
  %168 = vmatmul.f32.gmra.mxu0 %v33
  %v169 = vpop.f32.mrf.mxu0
  %v170 = vadd.f32 %v85, %v169
  %171 = vdwg.mxu0
  %172 = vmatpush.msra.mxu0 %v81
  %173 = vmatpush.msra.mxu0 %v78
  %174 = vmatpush.msra.mxu0 %v75
  %175 = vmatpush.msra.mxu0 %v72
  %176 = vmatpush.msra.mxu0 %v69
  %177 = vmatpush.msra.mxu0 %v66
  %178 = vmatpush.msra.mxu0 %v63
  %179 = vmatpush.msra.mxu0 %v60
  %180 = vmatpush.msra.mxu0 %v57
  %181 = vmatpush.msra.mxu0 %v54
  %182 = vmatpush.msra.mxu0 %v51
  %183 = vmatpush.msra.mxu0 %v48
  %184 = vmatpush.msra.mxu0 %v45
  %185 = vmatpush.msra.mxu0 %v42
  %186 = vmatpush.msra.mxu0 %v39
  %187 = vmatpush.msra.mxu0 %v36
  %188 = vmatmul.f32.gmra.mxu0 %v26
  %v189 = vpop.f32.mrf.mxu0
  %v190 = vadd.f32 %v86, %v189
  %191 = vmatmul.f32.gmra.mxu0 %v27
  %v192 = vpop.f32.mrf.mxu0
  %v193 = vadd.f32 %v86, %v192
  %194 = vmatmul.f32.gmra.mxu0 %v28
  %v195 = vpop.f32.mrf.mxu0
  %v196 = vadd.f32 %v86, %v195
  %197 = vmatmul.f32.gmra.mxu0 %v29
  %v198 = vpop.f32.mrf.mxu0
  %v199 = vadd.f32 %v86, %v198
  %200 = vmatmul.f32.gmra.mxu0 %v30
  %v201 = vpop.f32.mrf.mxu0
  %v202 = vadd.f32 %v86, %v201
  %203 = vmatmul.f32.gmra.mxu0 %v31
  %v204 = vpop.f32.mrf.mxu0
  %v205 = vadd.f32 %v86, %v204
  %206 = vmatmul.f32.gmra.mxu0 %v32
  %v207 = vpop.f32.mrf.mxu0
  %v208 = vadd.f32 %v86, %v207
  %209 = vmatmul.f32.gmra.mxu0 %v33
  %v210 = vpop.f32.mrf.mxu0
  %v211 = vadd.f32 %v86, %v210
  %212 = vdwg.mxu0
  %v213 = vmul.f32 %v108, 0.17677669
  %v214 = vmul.f32 %v111, 0.17677669
  %v215 = vmul.f32 %v114, 0.17677669
  %v216 = vmul.f32 %v117, 0.17677669
  %v217 = vmul.f32 %v120, 0.17677669
  %v218 = vmul.f32 %v123, 0.17677669
  %v219 = vmul.f32 %v126, 0.17677669
  %v220 = vmul.f32 %v129, 0.17677669
  %221 = vmatpush.xpose.msra.mxu0 0.0
  %222 = vmatpush.xpose.msra.mxu0 0.0
  %223 = vmatpush.xpose.msra.mxu0 0.0
  %224 = vmatpush.xpose.msra.mxu0 0.0
  %225 = vmatpush.xpose.msra.mxu0 0.0
  %226 = vmatpush.xpose.msra.mxu0 0.0
  %227 = vmatpush.xpose.msra.mxu0 0.0
  %228 = vmatpush.xpose.msra.mxu0 0.0
  %229 = vmatpush.xpose.msra.mxu0 %v170
  %230 = vmatpush.xpose.msra.mxu0 %v167
  %231 = vmatpush.xpose.msra.mxu0 %v164
  %232 = vmatpush.xpose.msra.mxu0 %v161
  %233 = vmatpush.xpose.msra.mxu0 %v158
  %234 = vmatpush.xpose.msra.mxu0 %v155
  %235 = vmatpush.xpose.msra.mxu0 %v152
  %236 = vmatpush.xpose.msra.mxu0 %v149
  %237 = vmatmul.f32.gmra.mxu0 %v213
  %v238 = vpop.f32.mrf.mxu0
  %v239 = vadd.f32 0.0, %v238
  %240 = vmatmul.f32.gmra.mxu0 %v214
  %v241 = vpop.f32.mrf.mxu0
  %v242 = vadd.f32 0.0, %v241
  %243 = vmatmul.f32.gmra.mxu0 %v215
  %v244 = vpop.f32.mrf.mxu0
  %v245 = vadd.f32 0.0, %v244
  %246 = vmatmul.f32.gmra.mxu0 %v216
  %v247 = vpop.f32.mrf.mxu0
  %v248 = vadd.f32 0.0, %v247
  %249 = vmatmul.f32.gmra.mxu0 %v217
  %v250 = vpop.f32.mrf.mxu0
  %v251 = vadd.f32 0.0, %v250
  %252 = vmatmul.f32.gmra.mxu0 %v218
  %v253 = vpop.f32.mrf.mxu0
  %v254 = vadd.f32 0.0, %v253
  %255 = vmatmul.f32.gmra.mxu0 %v219
  %v256 = vpop.f32.mrf.mxu0
  %v257 = vadd.f32 0.0, %v256
  %258 = vmatmul.f32.gmra.mxu0 %v220
  %v259 = vpop.f32.mrf.mxu0
  %v260 = vadd.f32 0.0, %v259
  %261 = vdwg.mxu0
  %vm262 = vcmask 523264
  %v263 = vsel %vm262, %v239, -inf
  %264 = vmax.xlane.f32.xlu0 %v263
  %v265 = vpop.xlane.xlu0 %264
  %v266 = vsel %vm262, %v242, -inf
  %267 = vmax.xlane.f32.xlu0 %v266
  %v268 = vpop.xlane.xlu0 %267
  %v269 = vsel %vm262, %v245, -inf
  %270 = vmax.xlane.f32.xlu0 %v269
  %v271 = vpop.xlane.xlu0 %270
  %v272 = vsel %vm262, %v248, -inf
  %273 = vmax.xlane.f32.xlu0 %v272
  %v274 = vpop.xlane.xlu0 %273
  %v275 = vsel %vm262, %v251, -inf
  %276 = vmax.xlane.f32.xlu0 %v275
  %v277 = vpop.xlane.xlu0 %276
  %v278 = vsel %vm262, %v254, -inf
  %279 = vmax.xlane.f32.xlu0 %v278
  %v280 = vpop.xlane.xlu0 %279
  %v281 = vsel %vm262, %v257, -inf
  %282 = vmax.xlane.f32.xlu0 %v281
  %v283 = vpop.xlane.xlu0 %282
  %v284 = vsel %vm262, %v260, -inf
  %285 = vmax.xlane.f32.xlu0 %v284
  %v286 = vpop.xlane.xlu0 %285
  %v287 = vsub.f32 %v239, %v265
  %v288 = vsub.f32 %v242, %v268
  %v289 = vsub.f32 %v245, %v271
  %v290 = vsub.f32 %v248, %v274
  %v291 = vsub.f32 %v251, %v277
  %v292 = vsub.f32 %v254, %v280
  %v293 = vsub.f32 %v257, %v283
  %v294 = vsub.f32 %v260, %v286
  %v295 = vmul.f32 %v287, 1.442695
  %v296 = vpow.pop %v295
  %v297 = vmul.f32 %v288, 1.442695
  %v298 = vpow.pop %v297
  %v299 = vmul.f32 %v289, 1.442695
  %v300 = vpow.pop %v299
  %v301 = vmul.f32 %v290, 1.442695
  %v302 = vpow.pop %v301
  %v303 = vmul.f32 %v291, 1.442695
  %v304 = vpow.pop %v303
  %v305 = vmul.f32 %v292, 1.442695
  %v306 = vpow.pop %v305
  %v307 = vmul.f32 %v293, 1.442695
  %v308 = vpow.pop %v307
  %v309 = vmul.f32 %v294, 1.442695
  %v310 = vpow.pop %v309
  %v311 = vsel %vm262, %v296, 0.0
  %312 = vadd.xlane.f32.xlu0 %v311
  %v313 = vpop.xlane.xlu0 %312
  %v314 = vsel %vm262, %v298, 0.0
  %315 = vadd.xlane.f32.xlu0 %v314
  %v316 = vpop.xlane.xlu0 %315
  %v317 = vsel %vm262, %v300, 0.0
  %318 = vadd.xlane.f32.xlu0 %v317
  %v319 = vpop.xlane.xlu0 %318
  %v320 = vsel %vm262, %v302, 0.0
  %321 = vadd.xlane.f32.xlu0 %v320
  %v322 = vpop.xlane.xlu0 %321
  %v323 = vsel %vm262, %v304, 0.0
  %324 = vadd.xlane.f32.xlu0 %v323
  %v325 = vpop.xlane.xlu0 %324
  %v326 = vsel %vm262, %v306, 0.0
  %327 = vadd.xlane.f32.xlu0 %v326
  %v328 = vpop.xlane.xlu0 %327
  %v329 = vsel %vm262, %v308, 0.0
  %330 = vadd.xlane.f32.xlu0 %v329
  %v331 = vpop.xlane.xlu0 %330
  %v332 = vsel %vm262, %v310, 0.0
  %333 = vadd.xlane.f32.xlu0 %v332
  %v334 = vpop.xlane.xlu0 %333
  %v336 = vsel %vm262, %v296, 0
  %v339 = vsel %vm262, %v298, 0
  %v342 = vsel %vm262, %v300, 0
  %v345 = vsel %vm262, %v302, 0
  %v348 = vsel %vm262, %v304, 0
  %v351 = vsel %vm262, %v306, 0
  %v354 = vsel %vm262, %v308, 0
  %v357 = vsel %vm262, %v310, 0
  %359 = vmatpush.msra.mxu0 0.0
  %360 = vmatpush.msra.mxu0 0.0
  %361 = vmatpush.msra.mxu0 0.0
  %362 = vmatpush.msra.mxu0 0.0
  %363 = vmatpush.msra.mxu0 0.0
  %364 = vmatpush.msra.mxu0 0.0
  %365 = vmatpush.msra.mxu0 0.0
  %366 = vmatpush.msra.mxu0 0.0
  %367 = vmatpush.msra.mxu0 %v211
  %368 = vmatpush.msra.mxu0 %v208
  %369 = vmatpush.msra.mxu0 %v205
  %370 = vmatpush.msra.mxu0 %v202
  %371 = vmatpush.msra.mxu0 %v199
  %372 = vmatpush.msra.mxu0 %v196
  %373 = vmatpush.msra.mxu0 %v193
  %374 = vmatpush.msra.mxu0 %v190
  %375 = vmatmul.f32.gmra.mxu0 %v336
  %v376 = vpop.f32.mrf.mxu0
  %v377 = vadd.f32 0.0, %v376
  %378 = vmatmul.f32.gmra.mxu0 %v339
  %v379 = vpop.f32.mrf.mxu0
  %v380 = vadd.f32 0.0, %v379
  %381 = vmatmul.f32.gmra.mxu0 %v342
  %v382 = vpop.f32.mrf.mxu0
  %v383 = vadd.f32 0.0, %v382
  %384 = vmatmul.f32.gmra.mxu0 %v345
  %v385 = vpop.f32.mrf.mxu0
  %v386 = vadd.f32 0.0, %v385
  %387 = vmatmul.f32.gmra.mxu0 %v348
  %v388 = vpop.f32.mrf.mxu0
  %v389 = vadd.f32 0.0, %v388
  %390 = vmatmul.f32.gmra.mxu0 %v351
  %v391 = vpop.f32.mrf.mxu0
  %v392 = vadd.f32 0.0, %v391
  %393 = vmatmul.f32.gmra.mxu0 %v354
  %v394 = vpop.f32.mrf.mxu0
  %v395 = vadd.f32 0.0, %v394
  %396 = vmatmul.f32.gmra.mxu0 %v357
  %v397 = vpop.f32.mrf.mxu0
  %v398 = vadd.f32 0.0, %v397
  %399 = vdwg.mxu0
  %v400 = vrcp.pop %v313
  %v401 = vmul.f32 %v313, %v400
  %v402 = vsub.f32 1.0, %v401
  %v403 = vmul.f32 %v400, %v402
  %v404 = vadd.f32 %v400, %v403
  %vm405 = vweird.f32 %v313
  %vm406 = vweird.f32 %v400
  %vm407 = vmor %vm405, %vm406
  %v408 = vsel %vm407, %v400, %v404
  %v409 = vand.u32 2147483647, %v313
  %vm410 = vcmp.eq.f32.partialorder %v409, 8.507059e+37
  %v411 = vand.u32 %v313, 2147483648
  %v412 = vor.u32 1.1754944e-38, %v411
  %v413 = vsel %vm410, %v412, %v408
  %v414 = vmul.f32 %v377, %v413
  %v415 = vrcp.pop %v316
  %v416 = vmul.f32 %v316, %v415
  %v417 = vsub.f32 1.0, %v416
  %v418 = vmul.f32 %v415, %v417
  %v419 = vadd.f32 %v415, %v418
  %vm420 = vweird.f32 %v316
  %vm421 = vweird.f32 %v415
  %vm422 = vmor %vm420, %vm421
  %v423 = vsel %vm422, %v415, %v419
  %v424 = vand.u32 2147483647, %v316
  %vm425 = vcmp.eq.f32.partialorder %v424, 8.507059e+37
  %v426 = vand.u32 %v316, 2147483648
  %v427 = vor.u32 1.1754944e-38, %v426
  %v428 = vsel %vm425, %v427, %v423
  %v429 = vmul.f32 %v380, %v428
  %v430 = vrcp.pop %v319
  %v431 = vmul.f32 %v319, %v430
  %v432 = vsub.f32 1.0, %v431
  %v433 = vmul.f32 %v430, %v432
  %v434 = vadd.f32 %v430, %v433
  %vm435 = vweird.f32 %v319
  %vm436 = vweird.f32 %v430
  %vm437 = vmor %vm435, %vm436
  %v438 = vsel %vm437, %v430, %v434
  %v439 = vand.u32 2147483647, %v319
  %vm440 = vcmp.eq.f32.partialorder %v439, 8.507059e+37
  %v441 = vand.u32 %v319, 2147483648
  %v442 = vor.u32 1.1754944e-38, %v441
  %v443 = vsel %vm440, %v442, %v438
  %v444 = vmul.f32 %v383, %v443
  %v445 = vrcp.pop %v322
  %v446 = vmul.f32 %v322, %v445
  %v447 = vsub.f32 1.0, %v446
  %v448 = vmul.f32 %v445, %v447
  %v449 = vadd.f32 %v445, %v448
  %vm450 = vweird.f32 %v322
  %vm451 = vweird.f32 %v445
  %vm452 = vmor %vm450, %vm451
  %v453 = vsel %vm452, %v445, %v449
  %v454 = vand.u32 2147483647, %v322
  %vm455 = vcmp.eq.f32.partialorder %v454, 8.507059e+37
  %v456 = vand.u32 %v322, 2147483648
  %v457 = vor.u32 1.1754944e-38, %v456
  %v458 = vsel %vm455, %v457, %v453
  %v459 = vmul.f32 %v386, %v458
  %v460 = vrcp.pop %v325
  %v461 = vmul.f32 %v325, %v460
  %v462 = vsub.f32 1.0, %v461
  %v463 = vmul.f32 %v460, %v462
  %v464 = vadd.f32 %v460, %v463
  %vm465 = vweird.f32 %v325
  %vm466 = vweird.f32 %v460
  %vm467 = vmor %vm465, %vm466
  %v468 = vsel %vm467, %v460, %v464
  %v469 = vand.u32 2147483647, %v325
  %vm470 = vcmp.eq.f32.partialorder %v469, 8.507059e+37
  %v471 = vand.u32 %v325, 2147483648
  %v472 = vor.u32 1.1754944e-38, %v471
  %v473 = vsel %vm470, %v472, %v468
  %v474 = vmul.f32 %v389, %v473
  %v475 = vrcp.pop %v328
  %v476 = vmul.f32 %v328, %v475
  %v477 = vsub.f32 1.0, %v476
  %v478 = vmul.f32 %v475, %v477
  %v479 = vadd.f32 %v475, %v478
  %vm480 = vweird.f32 %v328
  %vm481 = vweird.f32 %v475
  %vm482 = vmor %vm480, %vm481
  %v483 = vsel %vm482, %v475, %v479
  %v484 = vand.u32 2147483647, %v328
  %vm485 = vcmp.eq.f32.partialorder %v484, 8.507059e+37
  %v486 = vand.u32 %v328, 2147483648
  %v487 = vor.u32 1.1754944e-38, %v486
  %v488 = vsel %vm485, %v487, %v483
  %v489 = vmul.f32 %v392, %v488
  %v490 = vrcp.pop %v331
  %v491 = vmul.f32 %v331, %v490
  %v492 = vsub.f32 1.0, %v491
  %v493 = vmul.f32 %v490, %v492
  %v494 = vadd.f32 %v490, %v493
  %vm495 = vweird.f32 %v331
  %vm496 = vweird.f32 %v490
  %vm497 = vmor %vm495, %vm496
  %v498 = vsel %vm497, %v490, %v494
  %v499 = vand.u32 2147483647, %v331
  %vm500 = vcmp.eq.f32.partialorder %v499, 8.507059e+37
  %v501 = vand.u32 %v331, 2147483648
  %v502 = vor.u32 1.1754944e-38, %v501
  %v503 = vsel %vm500, %v502, %v498
  %v504 = vmul.f32 %v395, %v503
  %v505 = vrcp.pop %v334
  %v506 = vmul.f32 %v334, %v505
  %v507 = vsub.f32 1.0, %v506
  %v508 = vmul.f32 %v505, %v507
  %v509 = vadd.f32 %v505, %v508
  %vm510 = vweird.f32 %v334
  %vm511 = vweird.f32 %v505
  %vm512 = vmor %vm510, %vm511
  %v513 = vsel %vm512, %v505, %v509
  %v514 = vand.u32 2147483647, %v334
  %vm515 = vcmp.eq.f32.partialorder %v514, 8.507059e+37
  %v516 = vand.u32 %v334, 2147483648
  %v517 = vor.u32 1.1754944e-38, %v516
  %v518 = vsel %vm515, %v517, %v513
  %v519 = vmul.f32 %v398, %v518
  %v520 = vsub.f32 %v414, %v190
  %v521 = vsub.f32 %v429, %v193
  %v522 = vsub.f32 %v444, %v196
  %v523 = vsub.f32 %v459, %v199
  %v524 = vsub.f32 %v474, %v202
  %v525 = vsub.f32 %v489, %v205
  %v526 = vsub.f32 %v504, %v208
  %v527 = vsub.f32 %v519, %v211
  %v528 = vld [vmem:[%s3] sm:$0xff]
  %v529 = vld [vmem:[%s3 + $0x8] sm:$0xff]
  %v530 = vld [vmem:[%s3 + $0x10] sm:$0xff]
  %v531 = vld [vmem:[%s3 + $0x18] sm:$0xff]
  %v532 = vld [vmem:[%s3 + $0x20] sm:$0xff]
  %v533 = vld [vmem:[%s3 + $0x28] sm:$0xff]
  %v534 = vld [vmem:[%s3 + $0x30] sm:$0xff]
  %v535 = vld [vmem:[%s3 + $0x38] sm:$0xff]
  %v536 = vld [vmem:[%s3 + $0x40] sm:$0xff]
  %v537 = vld [vmem:[%s3 + $0x48] sm:$0xff]
  %v538 = vld [vmem:[%s3 + $0x50] sm:$0xff]
  %v539 = vld [vmem:[%s3 + $0x58] sm:$0xff]
  %v540 = vld [vmem:[%s3 + $0x60] sm:$0xff]
  %v541 = vld [vmem:[%s3 + $0x68] sm:$0xff]
  %v542 = vld [vmem:[%s3 + $0x70] sm:$0xff]
  %v543 = vld [vmem:[%s3 + $0x78] sm:$0xff]
  %v544 = vld [vmem:[%s4] sm:$0x1]
  %v546 = vperm.slane %v544, 0
  %548 = vmatpush.msra.mxu0 %v543
  %549 = vmatpush.msra.mxu0 %v542
  %550 = vmatpush.msra.mxu0 %v541
  %551 = vmatpush.msra.mxu0 %v540
  %552 = vmatpush.msra.mxu0 %v539
  %553 = vmatpush.msra.mxu0 %v538
  %554 = vmatpush.msra.mxu0 %v537
  %555 = vmatpush.msra.mxu0 %v536
  %556 = vmatpush.msra.mxu0 %v535
  %557 = vmatpush.msra.mxu0 %v534
  %558 = vmatpush.msra.mxu0 %v533
  %559 = vmatpush.msra.mxu0 %v532
  %560 = vmatpush.msra.mxu0 %v531
  %561 = vmatpush.msra.mxu0 %v530
  %562 = vmatpush.msra.mxu0 %v529
  %563 = vmatpush.msra.mxu0 %v528
  %564 = vmatmul.f32.gmra.mxu0 %v520
  %v565 = vpop.f32.mrf.mxu0
  %v566 = vadd.f32 %v546, %v565
  %567 = vmatmul.f32.gmra.mxu0 %v521
  %v568 = vpop.f32.mrf.mxu0
  %v569 = vadd.f32 %v546, %v568
  %570 = vmatmul.f32.gmra.mxu0 %v522
  %v571 = vpop.f32.mrf.mxu0
  %v572 = vadd.f32 %v546, %v571
  %573 = vmatmul.f32.gmra.mxu0 %v523
  %v574 = vpop.f32.mrf.mxu0
  %v575 = vadd.f32 %v546, %v574
  %576 = vmatmul.f32.gmra.mxu0 %v524
  %v577 = vpop.f32.mrf.mxu0
  %v578 = vadd.f32 %v546, %v577
  %579 = vmatmul.f32.gmra.mxu0 %v525
  %v580 = vpop.f32.mrf.mxu0
  %v581 = vadd.f32 %v546, %v580
  %582 = vmatmul.f32.gmra.mxu0 %v526
  %v583 = vpop.f32.mrf.mxu0
  %v584 = vadd.f32 %v546, %v583
  %585 = vmatmul.f32.gmra.mxu0 %v527
  %v586 = vpop.f32.mrf.mxu0
  %v587 = vadd.f32 %v546, %v586
  %588 = vdwg.mxu0
  %v589 = vadd.f32 %v566, %v569
  %v590 = vadd.f32 %v589, %v572
  %v591 = vadd.f32 %v590, %v575
  %v592 = vadd.f32 %v591, %v578
  %v593 = vadd.f32 %v592, %v581
  %v594 = vadd.f32 %v593, %v584
  %v595 = vadd.f32 %v594, %v587
  %v596 = vrot.slane %v595, 4
  %v597 = vadd.f32 %v595, %v596
  %v598 = vrot.slane %v597, 2
  %v599 = vadd.f32 %v597, %v598
  %v600 = vrot.slane %v599, 1
  %v601 = vadd.f32 %v599, %v600
  %v602 = vrcp.pop 64.0
  %v603 = vmul.f32 64.0, %v602
  %v604 = vsub.f32 1.0, %v603
  %v605 = vmul.f32 %v602, %v604
  %v606 = vadd.f32 %v602, %v605
  %vm607 = vweird.f32 %v602
  %v608 = vsel %vm607, %v602, %v606
  %v609 = vmul.f32 %v601, %v608
  %v610 = vsub.f32 %v566, %v609
  %v611 = vsub.f32 %v569, %v609
  %v612 = vsub.f32 %v572, %v609
  %v613 = vsub.f32 %v575, %v609
  %v614 = vsub.f32 %v578, %v609
  %v615 = vsub.f32 %v581, %v609
  %v616 = vsub.f32 %v584, %v609
  %v617 = vsub.f32 %v587, %v609
  %v618 = vmul.f32 %v610, %v610
  %v619 = vmul.f32 %v611, %v611
  %v620 = vmul.f32 %v612, %v612
  %v621 = vmul.f32 %v613, %v613
  %v622 = vmul.f32 %v614, %v614
  %v623 = vmul.f32 %v615, %v615
  %v624 = vmul.f32 %v616, %v616
  %v625 = vmul.f32 %v617, %v617
  %v626 = vadd.f32 %v618, %v619
  %v627 = vadd.f32 %v626, %v620
  %v628 = vadd.f32 %v627, %v621
  %v629 = vadd.f32 %v628, %v622
  %v630 = vadd.f32 %v629, %v623
  %v631 = vadd.f32 %v630, %v624
  %v632 = vadd.f32 %v631, %v625
  %v633 = vrot.slane %v632, 4
  %v634 = vadd.f32 %v632, %v633
  %v635 = vrot.slane %v634, 2
  %v636 = vadd.f32 %v634, %v635
  %v637 = vrot.slane %v636, 1
  %v638 = vadd.f32 %v636, %v637
  %v639 = vmul.f32 %v638, %v608
  %v640 = vadd.f32 %v639, 1e-05
  %v641 = vrsqrt.pop %v640
  %v642 = vmul.f32 %v641, %v640
  %v643 = vmul.f32 %v642, %v641
  %v644 = vmul.f32 0.5, %v643
  %v645 = vsub.f32 1.5, %v644
  %v646 = vmul.f32 %v641, %v645
  %vm647 = vweird.f32 %v640
  %vm648 = vweird.f32 %v641
  %vm649 = vmor %vm647, %vm648
  %v650 = vsel %vm649, %v641, %v646
  %v651 = vmul.f32 %v610, %v650
  %v652 = vmul.f32 %v611, %v650
  %v653 = vmul.f32 %v612, %v650
  %v654 = vmul.f32 %v613, %v650
  %v655 = vmul.f32 %v614, %v650
  %v656 = vmul.f32 %v615, %v650
  %v657 = vmul.f32 %v616, %v650
  %v658 = vmul.f32 %v617, %v650
  %v659 = vld [vmem:[%s5] sm:$0x1]
  %v661 = vperm.slane %v659, 0
  %v663 = vmul.f32 %v651, %v661
  %v664 = vmul.f32 %v652, %v661
  %v665 = vmul.f32 %v653, %v661
  %v666 = vmul.f32 %v654, %v661
  %v667 = vmul.f32 %v655, %v661
  %v668 = vmul.f32 %v656, %v661
  %v669 = vmul.f32 %v657, %v661
  %v670 = vmul.f32 %v658, %v661
  %v671 = vld [vmem:[%s6] sm:$0x1]
  %v673 = vperm.slane %v671, 0
  %v675 = vadd.f32 %v663, %v673
  %v676 = vadd.f32 %v664, %v673
  %v677 = vadd.f32 %v665, %v673
  %v678 = vadd.f32 %v666, %v673
  %v679 = vadd.f32 %v667, %v673
  %v680 = vadd.f32 %v668, %v673
  %v681 = vadd.f32 %v669, %v673
  %v682 = vadd.f32 %v670, %v673
  %v683 = vmax.f32 %v675, 0.0
  %v684 = vmax.f32 %v676, 0.0
  %v685 = vmax.f32 %v677, 0.0
  %v686 = vmax.f32 %v678, 0.0
  %v687 = vmax.f32 %v679, 0.0
  %v688 = vmax.f32 %v680, 0.0
  %v689 = vmax.f32 %v681, 0.0
  %v690 = vmax.f32 %v682, 0.0
  %v691 = vadd.f32 %v683, %v26
  %v692 = vadd.f32 %v684, %v27
  %v693 = vadd.f32 %v685, %v28
  %v694 = vadd.f32 %v686, %v29
  %v695 = vadd.f32 %v687, %v30
  %v696 = vadd.f32 %v688, %v31
  %v697 = vadd.f32 %v689, %v32
  %v698 = vadd.f32 %v690, %v33
  %699 = vst [vmem:[%s7] sm:$0xff] %v691
  %700 = vst [vmem:[%s7 + $0x8] sm:$0xff] %v692
  %701 = vst [vmem:[%s7 + $0x10] sm:$0xff] %v693
  %702 = vst [vmem:[%s7 + $0x18] sm:$0xff] %v694
  %703 = vst [vmem:[%s7 + $0x20] sm:$0xff] %v695
  %704 = vst [vmem:[%s7 + $0x28] sm:$0xff] %v696
  %705 = vst [vmem:[%s7 + $0x30] sm:$0xff] %v697
  %706 = vst [vmem:[%s7 + $0x38] sm:$0xff] %v698
  // Predicated region
  $region30: #{resunet_position_attention.1} parent=0 // pred_check
    _
  $region31: #{resunet_position_attention.1} parent=0 // pred_check_branch
    %708 = sbr.rel (0) target = $region33
  $region32: #{resunet_position_attention.1} parent=0 // pred_region
    _
  $region33: #{resunet_position_attention.1} parent=0 // pred_fallthru
    _
  // Predicated region
  $region34: #{resunet_position_attention.1} parent=0 // pred_check
    _
  $region35: #{resunet_position_attention.1} parent=0 // pred_check_branch
    %710 = sbr.rel (0) target = $region37
  $region36: #{resunet_position_attention.1} parent=0 // pred_region
    _
  $region37: #{resunet_position_attention.1} parent=0 // pred_fallthru
    _

</llo_original>
